<compile_context>
chip_gen: v7x
topology: tpu7x:2x2x1
jax: 0.10.0
libtpu: 0.0.40
codegen_flags: <defaults>
</compile_context>

<pallas_src>
import jax
import jax.numpy as jnp
from jax.experimental import pallas as pl
from jax.experimental.pallas import tpu as pltpu


def _round_up(x, m):
    return (x + m - 1) // m * m


def _pick_tile(dim, candidates):
    """Largest candidate <= dim that divides dim; falls back to dim itself."""
    for c in candidates:
        if c <= dim and dim % c == 0:
            return c
    return dim


# Largest padded reduction dim handled as a single K tile (accumulator-free).
_MAX_SINGLE_K = 2048


# ---------------------------------------------------------------------------
# Kernels. W arrives pre-transposed as [K, N]; contraction is canonical jnp.dot.
# ---------------------------------------------------------------------------
def _mlp_kernel_single_k(x_ref, w_ref, b_ref, o_ref):
    # Whole reduction in one K tile: no f32 accumulator round trip, no branches.
    y = jnp.dot(x_ref[...], w_ref[...], preferred_element_type=jnp.float32)
    o_ref[...] = jnp.tanh(y + b_ref[...]).astype(o_ref.dtype)


def _mlp_kernel_multi_k(x_ref, w_ref, b_ref, o_ref, acc_ref):
    k = pl.program_id(2)

    @pl.when(k == 0)
    def _init():
        acc_ref[...] = jnp.zeros_like(acc_ref)

    acc_ref[...] += jnp.dot(x_ref[...], w_ref[...],
                            preferred_element_type=jnp.float32)

    @pl.when(k == pl.num_programs(2) - 1)
    def _finalize():
        o_ref[...] = jnp.tanh(acc_ref[...] + b_ref[...]).astype(o_ref.dtype)


# ---------------------------------------------------------------------------
# One-time parameter prep (hoist out of the per-call hot path).
# ---------------------------------------------------------------------------
def prepare_mlp_params(weight, bias, *, compute_dtype=jnp.bfloat16):
    """weight: [H_out, H_in] (PyTorch nn.Linear layout); bias: [H_out].

    Returns (w_t, b_row): w_t is [Hp_in, Hp_out] in compute_dtype (lane-dense
    padded, transposed once), b_row is [1, Hp_out] float32.
    """
    H_out, H_in = weight.shape
    Hp_in = _round_up(H_in, 128)
    Hp_out = _round_up(H_out, 128)
    w_t = jnp.pad(weight, ((0, Hp_out - H_out), (0, Hp_in - H_in))).T
    w_t = w_t.astype(compute_dtype)
    b_row = jnp.pad(bias, (0, Hp_out - H_out)).reshape(1, Hp_out).astype(jnp.float32)
    return w_t, b_row
    # TODO(synk): optional int8 (v5e/v6e) or fp8 (v7x) weight storage with a
    # per-channel scale folded into the f32 epilogue would halve W HBM bytes.


# ---------------------------------------------------------------------------
# Hot-path call on prepared params.
# ---------------------------------------------------------------------------
def mlp_layer_prepped(features, w_t, b_row, *, out_features):
    B, H_in = features.shape
    Hp_in, Hp_out = w_t.shape
    out_dtype = features.dtype
    compute_dtype = w_t.dtype

    # Row tiling: stream the H^2 weight as few times as possible (grid_m small).
    Bp = _round_up(B, 8)
    if Bp <= 512:
        tm = Bp                      # single M block: W read from HBM exactly once
    else:
        Bp = _round_up(B, 256)
        tm = _pick_tile(Bp, (512, 256))

    tn = _pick_tile(Hp_out, (512, 256, 128))
    if Hp_in <= _MAX_SINGLE_K:
        tk = Hp_in                   # single K step -> accumulator-free kernel
    else:
        tk = _pick_tile(Hp_in, (2048, 1024, 512, 256))
    assert Bp % tm == 0 and Hp_out % tn == 0 and Hp_in % tk == 0, (Bp, tm, Hp_out, tn, Hp_in, tk)

    xp = features
    if (Bp != B) or (Hp_in != H_in):
        xp = jnp.pad(features, ((0, Bp - B), (0, Hp_in - H_in)))
    xp = xp.astype(compute_dtype)

    grid_m, grid_n, grid_k = Bp // tm, Hp_out // tn, Hp_in // tk

    in_isz = jnp.dtype(compute_dtype).itemsize
    out_isz = jnp.dtype(out_dtype).itemsize
    footprint = (2 * tm * tk * in_isz            # x tiles (double-buffered)
                 + 2 * tk * tn * in_isz          # w tiles
                 + 2 * tn * 4                    # bias
                 + 2 * tm * tn * out_isz         # out tiles
                 + (tm * tn * 4 if grid_k > 1 else 0))   # f32 acc scratch
    # Keep headroom under v7x's 64 MiB physical VMEM (cap ~56 MiB).
    vmem_limit = int(min(footprint + (8 << 20), 56 << 20))

    cost = pl.CostEstimate(
        flops=2 * Bp * Hp_in * Hp_out,
        transcendentals=Bp * Hp_out,
        bytes_accessed=(xp.size * in_isz + w_t.size * in_isz
                        + b_row.size * 4 + Bp * Hp_out * out_isz))

    if grid_k > 1:
        kernel = _mlp_kernel_multi_k
        grid = (grid_m, grid_n, grid_k)
        in_specs = [
            pl.BlockSpec((tm, tk), lambda i, j, k: (i, k)),   # x tile
            pl.BlockSpec((tk, tn), lambda i, j, k: (k, j)),   # W^T tile [K, N]
            pl.BlockSpec((1, tn), lambda i, j, k: (0, j)),    # bias tile
        ]
        out_spec = pl.BlockSpec((tm, tn), lambda i, j, k: (i, j))
        scratch = [pltpu.VMEM((tm, tn), jnp.float32)]
        # Megacore: split N so both TCs together read the weight only once.
        if grid_n > 1:
            semantics = ("arbitrary", "parallel", "arbitrary")
        else:
            semantics = ("parallel", "arbitrary", "arbitrary")
    else:
        kernel = _mlp_kernel_single_k
        grid = (grid_m, grid_n)
        in_specs = [
            pl.BlockSpec((tm, tk), lambda i, j: (i, 0)),
            pl.BlockSpec((tk, tn), lambda i, j: (0, j)),
            pl.BlockSpec((1, tn), lambda i, j: (0, j)),
        ]
        out_spec = pl.BlockSpec((tm, tn), lambda i, j: (i, j))
        scratch = []
        if grid_n > 1:
            semantics = ("arbitrary", "parallel")
        else:
            semantics = ("parallel", "arbitrary")

    out = pl.pallas_call(
        kernel,
        out_shape=jax.ShapeDtypeStruct((Bp, Hp_out), out_dtype),
        grid_spec=pltpu.PrefetchScalarGridSpec(
            num_scalar_prefetch=0,
            grid=grid,
            in_specs=in_specs,
            out_specs=out_spec,
            scratch_shapes=scratch,
        ),
        compiler_params=pltpu.CompilerParams(
            dimension_semantics=semantics,
            vmem_limit_bytes=vmem_limit),
        cost_estimate=cost,
    )(xp, w_t, b_row)

    if (Bp != B) or (Hp_out != out_features):
        out = out[:B, :out_features]
    return out


def mlp_layer(features, weight, bias, *, compute_dtype=jnp.bfloat16):
    """Convenience wrapper (preps W inline). For repeated calls with a fixed
    weight, call prepare_mlp_params once and use mlp_layer_prepped."""
    w_t, b_row = prepare_mlp_params(weight, bias, compute_dtype=compute_dtype)
    return mlp_layer_prepped(features, w_t, b_row, out_features=weight.shape[0])


if __name__ == "__main__":
    # TODO(synk): for the literal B=8, H=32 pooler call the pallas_call is pure
    # launch/DMA overhead; in production either stack many pooler rows
    # (tm >= 128) or fuse this head into the preceding encoder kernel.
    B, H = 8, 32  # small shapes: batch=8, hidden_size=32
    key = jax.random.PRNGKey(0)
    k_x, k_w, k_b = jax.random.split(key, 3)

    # Deterministic nn.Linear-style init: U(-1/sqrt(H), 1/sqrt(H))
    bound = 1.0 / (H ** 0.5)
    weight = jax.random.uniform(k_w, (H, H), jnp.float32, -bound, bound)  # [out, in]
    bias = jax.random.uniform(k_b, (H,), jnp.float32, -bound, bound)
    features = jax.random.normal(k_x, (B, H), jnp.float32)

    ref = jnp.tanh(features @ weight.T + bias)

    # bf16-fed MXU path (f32 accumulation / f32 bias+tanh epilogue).
    # Weight prep is hoisted: pad/cast/transpose done once, reused per call.
    w_bf16, b_f32 = prepare_mlp_params(weight, bias, compute_dtype=jnp.bfloat16)
    out_bf16 = jax.block_until_ready(
        mlp_layer_prepped(features, w_bf16, b_f32, out_features=H))
    assert out_bf16.shape == (B, H)
    assert jnp.allclose(out_bf16, ref, atol=2e-2, rtol=2e-2)

    # Full-f32 path for tight numerical validation.
    w_f32, b32 = prepare_mlp_params(weight, bias, compute_dtype=jnp.float32)
    out_f32 = jax.block_until_ready(
        mlp_layer_prepped(features, w_f32, b32, out_features=H))
    assert out_f32.shape == (B, H)
    assert jnp.allclose(out_f32, ref, atol=1e-5, rtol=1e-5)

    print("KERNEL_OK")
</pallas_src>

<mosaic_0001>
module attributes {stable_mosaic.version = 11 : i64} {
  func.func @_mlp_kernel_single_k(%arg0: i32, %arg1: i32, %arg2: memref<8x128xbf16, #tpu.memory_space<vmem>>, %arg3: memref<128x128xbf16, #tpu.memory_space<vmem>>, %arg4: memref<1x128xf32, #tpu.memory_space<vmem>>, %arg5: memref<8x128xf32, #tpu.memory_space<vmem>>) attributes {dimension_semantics = [#tpu.dimension_semantics<parallel>, #tpu.dimension_semantics<arbitrary>], iteration_bounds = array<i64: 1, 1>, scalar_prefetch = 0 : i64, scratch_operands = 0 : i64, tpu.core_type = #tpu.core_type<tc>, window_params = [{transform_indices = @transform_0, window_bounds = array<i64: 8, 128>}, {transform_indices = @transform_1, window_bounds = array<i64: 128, 128>}, {transform_indices = @transform_2, window_bounds = array<i64: 1, 128>}, {transform_indices = @transform_3, window_bounds = array<i64: 8, 128>}]} {
    %c0 = arith.constant 0 : index
    %c0_0 = arith.constant 0 : index
    %0 = vector.load %arg2[%c0, %c0_0] : memref<8x128xbf16, #tpu.memory_space<vmem>>, vector<8x128xbf16>
    %c0_1 = arith.constant 0 : index
    %c0_2 = arith.constant 0 : index
    %1 = vector.load %arg3[%c0_1, %c0_2] : memref<128x128xbf16, #tpu.memory_space<vmem>>, vector<128x128xbf16>
    %cst = arith.constant dense<0.000000e+00> : vector<8x128xf32>
    %2 = tpu.matmul %0, %1, %cst {dimension_numbers = #tpu.dot_dimension_numbers<[1], [0], [0], [1], [0, 0, 1, 1], [], []>} : vector<8x128xbf16>, vector<128x128xbf16>, vector<8x128xf32> -> vector<8x128xf32>
    %c0_3 = arith.constant 0 : index
    %c0_4 = arith.constant 0 : index
    %3 = vector.load %arg4[%c0_3, %c0_4] : memref<1x128xf32, #tpu.memory_space<vmem>>, vector<1x128xf32>
    %4 = vector.broadcast %3 : vector<1x128xf32> to vector<8x128xf32>
    %5 = arith.addf %2, %4 : vector<8x128xf32>
    %6 = math.tanh %5 : vector<8x128xf32>
    %c0_5 = arith.constant 0 : index
    %c0_6 = arith.constant 0 : index
    %7 = vector.load %arg5[%c0_5, %c0_6] : memref<8x128xf32, #tpu.memory_space<vmem>>, vector<8x128xf32>
    tpu.vector_store %arg5[%c0_5, %c0_6], %6 {strides = array<i32>} : memref<8x128xf32, #tpu.memory_space<vmem>>, vector<8x128xf32>,
    return
  }
  func.func @transform_0(%arg0: i32, %arg1: i32) -> (i32, i32) {
    %c0_i32 = arith.constant 0 : i32
    %c0_i32_0 = arith.constant 0 : i32
    return %arg0, %c0_i32 : i32, i32
  }
  func.func @transform_1(%arg0: i32, %arg1: i32) -> (i32, i32) {
    %c0_i32 = arith.constant 0 : i32
    %c0_i32_0 = arith.constant 0 : i32
    return %c0_i32, %arg1 : i32, i32
  }
  func.func @transform_2(%arg0: i32, %arg1: i32) -> (i32, i32) {
    %c0_i32 = arith.constant 0 : i32
    %c0_i32_0 = arith.constant 0 : i32
    return %c0_i32, %arg1 : i32, i32
  }
  func.func @transform_3(%arg0: i32, %arg1: i32) -> (i32, i32) {
    %c0_i32 = arith.constant 0 : i32
    return %arg0, %arg1 : i32, i32
  }
}

</mosaic_0001>

<llo_original>
// kernel: tpu_custom_call.1
$region0: #{tpu_custom_call.1}
  #allocation0 [shape = 'u32[]', space=smem, size = 0x4, offset = 0x4, fixed_abs, tag = 'smem constant byte address 0x4 - core index']
  #allocation1 [shape = 'u32[144,128]{1,0:T(1,128)}', space=vmem, size = 0x12000, scoped, tag = 'internal scratch']
  %s0 = inlined_call_operand.hbm [shape: bf16[8,128], index: 0, kind: input, shape index: {}]
  %s1 = inlined_call_operand.hbm [shape: bf16[128,128], index: 1, kind: input, shape index: {}]
  %s2 = inlined_call_operand.vmem [shape: f32[1,128], index: 2, kind: input, shape index: {}]
  %s3 = inlined_call_operand.hbm [shape: f32[8,128], index: 3, kind: output, shape index: {}]
  %s4 = sld [smem:[#allocation0]]
  $region30: #{tpu_custom_call.1} parent=0
    _
  %s6 = ssub.s32 1, %s4
  %s7 = scalar_select 0, %s6, %s4
  $region1: #{tpu_custom_call.1} parent=0
    #allocation2 [shape = 'u8[2048]{0}', space=vmem, size = 0x800, scoped, tag = 'input window, operand 0, single buffered']
    #allocation3 [shape = 's32[1]{0}', space=sflag, size = 0x4, scoped, tag = 'scoped memory for tpu_custom_call.1']
    #allocation4 [shape = 's32[1]{0}', space=sflag, size = 0x4, scoped, tag = 'scoped memory for tpu_custom_call.1']
    #allocation5 [shape = 'u8[32768]{0}', space=vmem, size = 0x8000, scoped, tag = 'input window, operand 1, single buffered']
    #allocation6 [shape = 's32[1]{0}', space=sflag, size = 0x4, scoped, tag = 'scoped memory for tpu_custom_call.1']
    #allocation7 [shape = 'u8[4096]{0}', space=vmem, size = 0x1000, scoped, tag = 'output window, operand 0, single buffered']
    %8 = vsyncpa [#allocation3], 0
    %9 = vsyncpa [#allocation6], 0
    %10 = vsyncpa [#allocation4], 0
    // Predicated region
    $region2: #{tpu_custom_call.1} parent=1 // pred_check
      _
    $region3: #{tpu_custom_call.1} parent=1 // pred_check_branch
      %12 = sbr.rel (0) target = $region5
    $region4: #{tpu_custom_call.1} parent=1 // pred_region
      %s14 = ssub.s32 64, 64
      %15 = vsyncadd [#allocation3], %s14
      %s17 = sshll.u32 [#allocation2], 4
      %s18 = int_to_ptr.vmem [resolvable:$true] %s17
      %20 = dma.hbm_to_vmem [thread:$0]  %s0, 64, %s18, [#allocation3]
    $region5: #{tpu_custom_call.1} parent=1 // pred_fallthru
      _
    // Predicated region
    $region6: #{tpu_custom_call.1} parent=1 // pred_check
      _
    $region7: #{tpu_custom_call.1} parent=1 // pred_check_branch
      %22 = sbr.rel (0) target = $region9
    $region8: #{tpu_custom_call.1} parent=1 // pred_region
      %s24 = ssub.s32 1024, 1024
      %25 = vsyncadd [#allocation6], %s24
      %s26 = sshll.u32 [#allocation5], 4
      %s27 = int_to_ptr.vmem [resolvable:$true] %s26
      %32 = dma.hbm_to_vmem [thread:$0]  %s1, 1024, %s27, [#allocation6], 64, 64, 4
    $region9: #{tpu_custom_call.1} parent=1 // pred_fallthru
      _
    // Predicated region
    $region10: #{tpu_custom_call.1} parent=1 // pred_check
      _
    $region11: #{tpu_custom_call.1} parent=1 // pred_check_branch
      %34 = sbr.rel (0) target = $region13
    $region12: #{tpu_custom_call.1} parent=1 // pred_region
      _
    $region13: #{tpu_custom_call.1} parent=1 // pred_fallthru
      _
    // Predicated region
    $region14: #{tpu_custom_call.1} parent=1 // pred_check
      _
    $region15: #{tpu_custom_call.1} parent=1 // pred_check_branch
      %36 = sbr.rel (0) target = $region17
    $region16: #{tpu_custom_call.1} parent=1 // pred_region
      %37 = dma.done [#allocation3], 64
    $region17: #{tpu_custom_call.1} parent=1 // pred_fallthru
      _
    // Predicated region
    $region18: #{tpu_custom_call.1} parent=1 // pred_check
      _
    $region19: #{tpu_custom_call.1} parent=1 // pred_check_branch
      %39 = sbr.rel (0) target = $region21
    $region20: #{tpu_custom_call.1} parent=1 // pred_region
      %40 = dma.done [#allocation6], 1024
    $region21: #{tpu_custom_call.1} parent=1 // pred_fallthru
      _
    %v42 = vld [vmem:[#allocation2] sm:$0xf]
    %v43 = vld [vmem:[#allocation5] sm:$0xf]
    %v44 = vld [vmem:[#allocation5 + $0x4] sm:$0xf]
    %v45 = vld [vmem:[#allocation5 + $0x8] sm:$0xf]
    %v46 = vld [vmem:[#allocation5 + $0xc] sm:$0xf]
    %v47 = vld [vmem:[#allocation5 + $0x10] sm:$0xf]
    %v48 = vld [vmem:[#allocation5 + $0x14] sm:$0xf]
    %v49 = vld [vmem:[#allocation5 + $0x18] sm:$0xf]
    %v50 = vld [vmem:[#allocation5 + $0x1c] sm:$0xf]
    %v51 = vld [vmem:[#allocation5 + $0x20] sm:$0xf]
    %v52 = vld [vmem:[#allocation5 + $0x24] sm:$0xf]
    %v53 = vld [vmem:[#allocation5 + $0x28] sm:$0xf]
    %v54 = vld [vmem:[#allocation5 + $0x2c] sm:$0xf]
    %v55 = vld [vmem:[#allocation5 + $0x30] sm:$0xf]
    %v56 = vld [vmem:[#allocation5 + $0x34] sm:$0xf]
    %v57 = vld [vmem:[#allocation5 + $0x38] sm:$0xf]
    %v58 = vld [vmem:[#allocation5 + $0x3c] sm:$0xf]
    %v59 = vld [vmem:[%s2] sm:$0x1]
    %v61 = vlaneseq
    %v62 = vshrl.u32 %v61, 7
    %v63 = vsub.s32 0, %v62
    %v64 = vrot.slane %v59, %v63
    %v82 = vunpack.c.l.b16 %v43
    %v83 = vunpack.c.l.b16 %v44
    %v84 = vunpack.c.l.b16 %v45
    %v85 = vunpack.c.l.b16 %v46
    %v86 = vunpack.c.l.b16 %v47
    %v87 = vunpack.c.l.b16 %v48
    %v88 = vunpack.c.l.b16 %v49
    %v89 = vunpack.c.l.b16 %v50
    %v90 = vunpack.c.l.b16 %v51
    %v91 = vunpack.c.l.b16 %v52
    %v92 = vunpack.c.l.b16 %v53
    %v93 = vunpack.c.l.b16 %v54
    %v94 = vunpack.c.l.b16 %v55
    %v95 = vunpack.c.l.b16 %v56
    %v96 = vunpack.c.l.b16 %v57
    %v97 = vunpack.c.l.b16 %v58
    %v98 = vpack.c.b16 %v83, %v82
    %v99 = vpack.c.b16 %v85, %v84
    %v100 = vpack.c.b16 %v87, %v86
    %v101 = vpack.c.b16 %v89, %v88
    %v102 = vpack.c.b16 %v91, %v90
    %v103 = vpack.c.b16 %v93, %v92
    %v104 = vpack.c.b16 %v95, %v94
    %v105 = vpack.c.b16 %v97, %v96
    %114 = vmatprep.subr.bf16.mxu0 0
    %115 = vmatpush1.bf16.msra.mxu0 %v98
    %116 = vmatprep.subr.bf16.mxu0 0
    %117 = vmatpush1.bf16.msra.mxu0 %v99
    %118 = vmatprep.subr.bf16.mxu0 0
    %119 = vmatpush1.bf16.msra.mxu0 %v100
    %120 = vmatprep.subr.bf16.mxu0 0
    %121 = vmatpush1.bf16.msra.mxu0 %v101
    %122 = vmatprep.subr.bf16.mxu0 0
    %123 = vmatpush1.bf16.msra.mxu0 %v102
    %124 = vmatprep.subr.bf16.mxu0 0
    %125 = vmatpush1.bf16.msra.mxu0 %v103
    %126 = vmatprep.subr.bf16.mxu0 0
    %127 = vmatpush1.bf16.msra.mxu0 %v104
    %128 = vmatprep.subr.bf16.mxu0 0
    %129 = vmatpush1.bf16.msra.mxu0 %v105
    %130 = vmatprep.subr.bf16.mxu0 0
    %131 = vmatpush1.bf16.msra.mxu0 0
    %132 = vmatprep.subr.bf16.mxu0 0
    %133 = vmatpush1.bf16.msra.mxu0 0
    %134 = vmatprep.subr.bf16.mxu0 0
    %135 = vmatpush1.bf16.msra.mxu0 0
    %136 = vmatprep.subr.bf16.mxu0 0
    %137 = vmatpush1.bf16.msra.mxu0 0
    %138 = vmatprep.subr.bf16.mxu0 0
    %139 = vmatpush1.bf16.msra.mxu0 0
    %140 = vmatprep.subr.bf16.mxu0 0
    %141 = vmatpush1.bf16.msra.mxu0 0
    %142 = vmatprep.subr.bf16.mxu0 0
    %143 = vmatpush1.bf16.msra.mxu0 0
    %144 = vmatprep.subr.bf16.mxu0 0
    %145 = vmatpush1.bf16.msra.mxu0 0
    %146 = vmatprep.mubr.bf16.mxu0 0
    %147 = vmatmul.mubr.bf16.gmra.mrb[0].mxu0 %v42
    %v148 = vpop.f32.mrb[0].mxu0
    %v149 = vadd.f32 %v64, %v148
    %v150 = vpop.f32.mrb[0].mxu0
    %v151 = vpop.f32.mrb[0].mxu0
    %v152 = vpop.f32.mrb[0].mxu0
    %153 = vdwg.mxu0
    %v154 = vtanh.pop %v149
    %155 = vst [vmem:[#allocation7] sm:$0xff] %v154
    // Predicated region
    $region22: #{tpu_custom_call.1} parent=1 // pred_check
      _
    $region23: #{tpu_custom_call.1} parent=1 // pred_check_branch
      %157 = sbr.rel (0) target = $region25
    $region24: #{tpu_custom_call.1} parent=1 // pred_region
      %s159 = ssub.s32 128, 128
      %160 = vsyncadd [#allocation4], %s159
      %s162 = sshll.u32 [#allocation7], 4
      %s163 = int_to_ptr.vmem [resolvable:$true] %s162
      %165 = dma.vmem_to_hbm [thread:$0]  %s163, 128, %s3, [#allocation4]
    $region25: #{tpu_custom_call.1} parent=1 // pred_fallthru
      _
    // Predicated region
    $region26: #{tpu_custom_call.1} parent=1 // pred_check
      _
    $region27: #{tpu_custom_call.1} parent=1 // pred_check_branch
      %167 = sbr.rel (0) target = $region29
    $region28: #{tpu_custom_call.1} parent=1 // pred_region
      %168 = dma.done [#allocation4], 128
    $region29: #{tpu_custom_call.1} parent=1 // pred_fallthru
      _
    %169 = vsyncpa [#allocation3], 1
    %170 = vsyncpa [#allocation6], 1
    %171 = vsyncpa [#allocation4], 1

</llo_original>
